<compile_context>
chip_gen: v7x
topology: tpu7x:2x2x1
jax: 0.10.0
libtpu: 0.0.40
codegen_flags: <defaults>
</compile_context>

<pallas_src>
import functools
import math

import jax
import jax.numpy as jnp
from jax.experimental import pallas as pl
from jax.experimental.pallas import tpu as pltpu


def _round_up(v, m):
    return ((v + m - 1) // m) * m


def _kview_graphconv_kernel(x_ref, adj_ref, w_ref, b_ref, o_ref, h_ref,
                            *, tm, adj_resident):
    # Grid: (max_view, num_row_tiles); both sequential ("arbitrary") because the
    # hop chain is a recurrence over k fed through a shared VMEM hop buffer.
    #   x_ref:   (N_pad, B*Din_p)        packed input (view 0), resident
    #   adj_ref: (N_pad, N_pad) resident OR (TM, N_pad) streamed row tile `m`
    #   w_ref:   (1, B*Din_p, B*Dout_p)  block-diagonal weights of view `k`
    #   b_ref:   (1, B*Dout_p)           packed bias
    #   o_ref:   (N_pad, B*Dout_p) f32   resident output / accumulator
    #   h_ref:   (2, N_pad, B*Din_p)     ping-pong buffer for the hop chain
    k = pl.program_id(0)
    m = pl.program_id(1)
    row0 = pl.multiple_of(m * tm, tm)
    w_k = w_ref[0]                                     # (B*Din_p, B*Dout_p)

    def adj_rows():
        if adj_resident:
            return adj_ref[pl.ds(row0, tm), :]         # slice resident A
        return adj_ref[...]                            # streamed row tile m

    @pl.when(k == 0)
    def _():
        # View 0 is x itself: projection only (no hop copy into h_ref).
        v = x_ref[pl.ds(row0, tm), :]
        o_ref[pl.ds(row0, tm), :] = (
            jnp.dot(v, w_k, preferred_element_type=jnp.float32)
            + b_ref[...].astype(jnp.float32))

    def hop(prev, dst_slot):
        # prev: (N_pad, B*Din_p) full hop state from view k-1.
        v = jnp.dot(adj_rows(), prev,
                    preferred_element_type=jnp.float32)       # (TM, B*Din_p)
        h_ref[dst_slot, pl.ds(row0, tm), :] = v.astype(h_ref.dtype)
        o_ref[pl.ds(row0, tm), :] = (
            o_ref[pl.ds(row0, tm), :]
            + jnp.dot(v, w_k, preferred_element_type=jnp.float32))

    @pl.when(k == 1)
    def _():
        hop(x_ref[...], 0)          # first hop reads x directly, writes slot 0

    @pl.when(k > 1)
    def _():
        parity = k % 2

        @pl.when(parity == 0)
        def _():
            hop(h_ref[0], 1)

        @pl.when(parity == 1)
        def _():
            hop(h_ref[1], 0)


def graph_conv(x, adj, w, bias, *, max_view, row_tile=256,
               adj_resident_bytes=12 * 2**20, force_stream=False):
    """x: (B, N, Din), adj: (N, N), w: (Din*max_view, Dout), bias: (Dout,).

    Returns (B, N, Dout) = concat([x, A x, A^2 x, ...], -1) @ w + bias.
    B may include a folded time axis (ASTGCN applies the same A per time step).
    """
    B, N, Din = x.shape
    Dout = w.shape[1]
    assert w.shape[0] == Din * max_view

    # ---- packing / padding (lane-dense layouts) ----------------------------
    tm = min(row_tile, _round_up(N, 8))
    n_pad = _round_up(N, tm)
    # Pad per-batch feature widths so packed lane widths are multiples of 128.
    step = 128 // math.gcd(B, 128)
    din_pad = _round_up(Din, step)
    dout_pad = _round_up(Dout, step)
    bd_in = B * din_pad
    bd_out = B * dout_pad

    # x: (B, N, Din) -> (N_pad, B*Din_pad): batch folded onto the lane axis.
    x_t = jnp.transpose(x, (1, 0, 2))                       # (N, B, Din)
    x_t = jnp.pad(x_t, ((0, n_pad - N), (0, 0), (0, din_pad - Din)))
    x_packed = x_t.reshape(n_pad, bd_in)

    adj_p = jnp.pad(adj, ((0, n_pad - N), (0, n_pad - N)))

    # Per-view block-diagonal weights (W_k on the batch diagonal) + packed bias.
    w_views = w.reshape(max_view, Din, Dout)                # rows view-major
    w_blk = jnp.zeros((max_view, bd_in, bd_out), dtype=w.dtype)
    b_packed = jnp.zeros((1, bd_out), dtype=bias.dtype)
    for bb in range(B):
        w_blk = w_blk.at[:, bb * din_pad:bb * din_pad + Din,
                         bb * dout_pad:bb * dout_pad + Dout].set(w_views)
        b_packed = b_packed.at[0, bb * dout_pad:bb * dout_pad + Dout].set(bias)

    num_row_tiles = n_pad // tm
    adj_item = jnp.dtype(adj.dtype).itemsize
    adj_resident = (not force_stream) and (
        n_pad * n_pad * adj_item <= adj_resident_bytes)

    def _single_buffered(shape, index_map):
        # Loop-invariant blocks: single-buffer when the API supports it.
        try:
            return pl.BlockSpec(shape, index_map, pipeline_mode=pl.Buffered(1))
        except TypeError:   # older API: default double-buffer (still correct)
            return pl.BlockSpec(shape, index_map)

    if adj_resident:
        adj_spec = _single_buffered((n_pad, n_pad), lambda k, m: (0, 0))
    else:
        # Streamed row tiles. adj is never read at k==0, so pin the block index
        # to 0 there and no tiles are (re)DMA'd during the view-0 pass.
        adj_spec = pl.BlockSpec(
            (tm, n_pad), lambda k, m: (jnp.where(k > 0, m, 0), 0))

    in_specs = [
        _single_buffered((n_pad, bd_in), lambda k, m: (0, 0)),        # x
        adj_spec,                                                     # A
        pl.BlockSpec((1, bd_in, bd_out), lambda k, m: (k, 0, 0)),     # W_k
        _single_buffered((1, bd_out), lambda k, m: (0, 0)),           # bias
    ]
    # Resident output (constant block index): accumulate in place, one HBM
    # writeback at grid end. f32 accumulation; cast in the wrapper.
    out_spec = pl.BlockSpec((n_pad, bd_out), lambda k, m: (0, 0))

    try:
        vmem_cap = int(pltpu.get_tpu_info().vmem_capacity_bytes)
    except Exception:
        vmem_cap = 64 * 2**20
    vmem_limit = int(min(64 * 2**20, max(32 * 2**20, 0.75 * vmem_cap)))

    itm = jnp.dtype(x.dtype).itemsize
    if adj_resident:
        adj_bytes = n_pad * n_pad * adj_item
    else:
        adj_bytes = ((max_view - 1) * n_pad * n_pad + tm * n_pad) * adj_item
    flops = (2 * (max_view - 1) * n_pad * n_pad * bd_in
             + 2 * max_view * n_pad * bd_in * bd_out)
    bytes_accessed = int(
        adj_bytes
        + n_pad * bd_in * itm
        + max_view * bd_in * bd_out * jnp.dtype(w.dtype).itemsize
        + bd_out * jnp.dtype(bias.dtype).itemsize
        + n_pad * bd_out * 4)

    kernel = functools.partial(_kview_graphconv_kernel, tm=tm,
                               adj_resident=adj_resident)

    out_packed = pl.pallas_call(
        kernel,
        out_shape=jax.ShapeDtypeStruct((n_pad, bd_out), jnp.float32),
        grid_spec=pltpu.PrefetchScalarGridSpec(
            num_scalar_prefetch=0,
            grid=(max_view, num_row_tiles),   # hop index outer, row tile inner
            in_specs=in_specs,
            out_specs=out_spec,
            scratch_shapes=[
                pltpu.VMEM((2, n_pad, bd_in), x.dtype),   # hop ping-pong
            ],
        ),
        compiler_params=pltpu.CompilerParams(
            dimension_semantics=("arbitrary", "arbitrary"),
            vmem_limit_bytes=vmem_limit,
        ),
        cost_estimate=pl.CostEstimate(
            flops=flops, transcendentals=0, bytes_accessed=bytes_accessed),
    )(x_packed, adj_p, w_blk, b_packed)

    # Unpack: (N_pad, B*Dout_pad) f32 -> (B, N, Dout)  (layout plumbing only).
    out = out_packed[:N].reshape(N, B, dout_pad)[:, :, :Dout]
    return jnp.transpose(out, (1, 0, 2)).astype(x.dtype)


def graph_conv_ref(x, adj, w, b, *, max_view):
    views = [x]
    h = x
    for _ in range(max_view - 1):
        h = jnp.einsum("nm,bmd->bnd", adj, h)
        views.append(h)
    cat = jnp.concatenate(views, axis=-1)
    return jnp.einsum("bnk,ko->bno", cat, w) + b


def _make_case(key, B, N, Din, Dout, max_view):
    kx, ka, kw, kb = jax.random.split(key, 4)
    x = jax.random.normal(kx, (B, N, Din), dtype=jnp.float32)
    # Row-normalized random adjacency (deterministic).
    a = jax.random.uniform(ka, (N, N), dtype=jnp.float32)
    adj = a / jnp.sum(a, axis=-1, keepdims=True)
    # nn.Linear(Din*max_view, Dout) -- PyTorch-style uniform init.
    fan_in = Din * max_view
    bound = 1.0 / math.sqrt(fan_in)
    w = jax.random.uniform(kw, (fan_in, Dout),
                           minval=-bound, maxval=bound, dtype=jnp.float32)
    b = jax.random.uniform(kb, (Dout,),
                           minval=-bound, maxval=bound, dtype=jnp.float32)
    return x, adj, w, b


if __name__ == "__main__":
    key = jax.random.PRNGKey(0)
    k1, k2 = jax.random.split(key)

    # Case 1: resident-adjacency fast path (small shapes per the module spec).
    B, N, Din, Dout, K = 2, 16, 8, 32, 3
    x, adj, w, b = _make_case(k1, B, N, Din, Dout, K)
    out = jax.block_until_ready(graph_conv(x, adj, w, b, max_view=K))
    ref = graph_conv_ref(x, adj, w, b, max_view=K)
    assert out.shape == (B, N, Dout)
    assert jnp.allclose(out, ref, atol=1e-4, rtol=1e-4)

    # Case 2: streamed-adjacency large-N fallback (forced, multi-row-tile grid,
    # non-multiple N to exercise padding).
    B, N, Din, Dout, K = 2, 40, 8, 32, 3
    x, adj, w, b = _make_case(k2, B, N, Din, Dout, K)
    out = jax.block_until_ready(
        graph_conv(x, adj, w, b, max_view=K, row_tile=16, force_stream=True))
    ref = graph_conv_ref(x, adj, w, b, max_view=K)
    assert out.shape == (B, N, Dout)
    assert jnp.allclose(out, ref, atol=1e-4, rtol=1e-4)

    print("KERNEL_OK")
</pallas_src>

<mosaic_0001>
module attributes {stable_mosaic.version = 11 : i64} {
  func.func @_kview_graphconv_kernel(%arg0: i32, %arg1: i32, %arg2: memref<16x128xf32, #tpu.memory_space<vmem>>, %arg3: memref<16x16xf32, #tpu.memory_space<vmem>>, %arg4: memref<1x128x128xf32, #tpu.memory_space<vmem>>, %arg5: memref<1x128xf32, #tpu.memory_space<vmem>>, %arg6: memref<16x128xf32, #tpu.memory_space<vmem>>, %arg7: memref<2x16x128xf32, #tpu.memory_space<vmem>>) attributes {dimension_semantics = [#tpu.dimension_semantics<arbitrary>, #tpu.dimension_semantics<arbitrary>], iteration_bounds = array<i64: 3, 1>, scalar_prefetch = 0 : i64, scratch_operands = 1 : i64, tpu.core_type = #tpu.core_type<tc>, window_params = [{pipeline_mode = #tpu.pipeline_mode<synchronous>, transform_indices = @transform_0, window_bounds = array<i64: 16, 128>}, {pipeline_mode = #tpu.pipeline_mode<synchronous>, transform_indices = @transform_1, window_bounds = array<i64: 16, 16>}, {transform_indices = @transform_2, window_bounds = array<i64: 1, 128, 128>}, {pipeline_mode = #tpu.pipeline_mode<synchronous>, transform_indices = @transform_3, window_bounds = array<i64: 1, 128>}, {pipeline_mode = #tpu.pipeline_mode<synchronous>, transform_indices = @transform_4, window_bounds = array<i64: 16, 128>}]} {
    %c16_i32 = arith.constant 16 : i32
    %0 = arith.muli %arg1, %c16_i32 : i32
    %1 = tpu.assume_multiple %0, 16 : i32
    %c0 = arith.constant 0 : index
    %c0_0 = arith.constant 0 : index
    %c0_1 = arith.constant 0 : index
    %2 = vector.load %arg4[%c0, %c0_0, %c0_1] : memref<1x128x128xf32, #tpu.memory_space<vmem>>, vector<1x128x128xf32>
    %3 = vector.shape_cast %2 : vector<1x128x128xf32> to vector<128x128xf32>
    %c0_i32 = arith.constant 0 : i32
    %4 = arith.cmpi eq, %arg0, %c0_i32 : i32
    %5 = arith.extui %4 : i1 to i32
    %c0_i32_2 = arith.constant 0 : i32
    %6 = arith.cmpi ne, %5, %c0_i32_2 : i32
    scf.if %6 {
      %13 = arith.index_cast %1 : i32 to index
      %c0_6 = arith.constant 0 : index
      %14 = vector.load %arg2[%13, %c0_6] : memref<16x128xf32, #tpu.memory_space<vmem>>, vector<16x128xf32>
      %cst = arith.constant dense<0.000000e+00> : vector<16x128xf32>
      %15 = tpu.matmul %14, %3, %cst {dimension_numbers = #tpu.dot_dimension_numbers<[1], [0], [0], [1], [0, 0, 1, 1], [], []>} : vector<16x128xf32>, vector<128x128xf32>, vector<16x128xf32> -> vector<16x128xf32>
      %c0_7 = arith.constant 0 : index
      %c0_8 = arith.constant 0 : index
      %16 = vector.load %arg5[%c0_7, %c0_8] : memref<1x128xf32, #tpu.memory_space<vmem>>, vector<1x128xf32>
      %17 = vector.broadcast %16 : vector<1x128xf32> to vector<16x128xf32>
      %18 = arith.addf %15, %17 : vector<16x128xf32>
      %19 = arith.index_cast %1 : i32 to index
      %c0_9 = arith.constant 0 : index
      %20 = vector.load %arg6[%19, %c0_9] : memref<16x128xf32, #tpu.memory_space<vmem>>, vector<16x128xf32>
      tpu.vector_store %arg6[%19, %c0_9], %18 {strides = array<i32>} : memref<16x128xf32, #tpu.memory_space<vmem>>, vector<16x128xf32>,
    } else {
    }
    %c1_i32 = arith.constant 1 : i32
    %7 = arith.cmpi eq, %arg0, %c1_i32 : i32
    %8 = arith.extui %7 : i1 to i32
    %c0_i32_3 = arith.constant 0 : i32
    %9 = arith.cmpi ne, %8, %c0_i32_3 : i32
    scf.if %9 {
      %c0_6 = arith.constant 0 : index
      %c0_7 = arith.constant 0 : index
      %13 = vector.load %arg2[%c0_6, %c0_7] : memref<16x128xf32, #tpu.memory_space<vmem>>, vector<16x128xf32>
      %14 = arith.index_cast %1 : i32 to index
      %c0_8 = arith.constant 0 : index
      %15 = vector.load %arg3[%14, %c0_8] : memref<16x16xf32, #tpu.memory_space<vmem>>, vector<16x16xf32>
      %cst = arith.constant dense<0.000000e+00> : vector<16x128xf32>
      %16 = tpu.matmul %15, %13, %cst {dimension_numbers = #tpu.dot_dimension_numbers<[1], [0], [0], [1], [0, 0, 1, 1], [], []>} : vector<16x16xf32>, vector<16x128xf32>, vector<16x128xf32> -> vector<16x128xf32>
      %c0_9 = arith.constant 0 : index
      %17 = arith.index_cast %1 : i32 to index
      %c0_10 = arith.constant 0 : index
      %18 = vector.load %arg7[%c0_9, %17, %c0_10] : memref<2x16x128xf32, #tpu.memory_space<vmem>>, vector<1x16x128xf32>
      %19 = vector.shape_cast %18 : vector<1x16x128xf32> to vector<16x128xf32>
      %20 = vector.shape_cast %16 : vector<16x128xf32> to vector<1x16x128xf32>
      tpu.vector_store %arg7[%c0_9, %17, %c0_10], %20 {strides = array<i32>} : memref<2x16x128xf32, #tpu.memory_space<vmem>>, vector<1x16x128xf32>,
      %21 = arith.index_cast %1 : i32 to index
      %c0_11 = arith.constant 0 : index
      %22 = vector.load %arg6[%21, %c0_11] : memref<16x128xf32, #tpu.memory_space<vmem>>, vector<16x128xf32>
      %cst_12 = arith.constant dense<0.000000e+00> : vector<16x128xf32>
      %23 = tpu.matmul %16, %3, %cst_12 {dimension_numbers = #tpu.dot_dimension_numbers<[1], [0], [0], [1], [0, 0, 1, 1], [], []>} : vector<16x128xf32>, vector<128x128xf32>, vector<16x128xf32> -> vector<16x128xf32>
      %24 = arith.addf %22, %23 : vector<16x128xf32>
      %25 = arith.index_cast %1 : i32 to index
      %c0_13 = arith.constant 0 : index
      %26 = vector.load %arg6[%25, %c0_13] : memref<16x128xf32, #tpu.memory_space<vmem>>, vector<16x128xf32>
      tpu.vector_store %arg6[%25, %c0_13], %24 {strides = array<i32>} : memref<16x128xf32, #tpu.memory_space<vmem>>, vector<16x128xf32>,
    } else {
    }
    %c1_i32_4 = arith.constant 1 : i32
    %10 = arith.cmpi sgt, %arg0, %c1_i32_4 : i32
    %11 = arith.extui %10 : i1 to i32
    %c0_i32_5 = arith.constant 0 : i32
    %12 = arith.cmpi ne, %11, %c0_i32_5 : i32
    scf.if %12 {
      %c2_i32 = arith.constant 2 : i32
      %c0_i32_6 = arith.constant 0 : i32
      %13 = arith.cmpi eq, %c2_i32, %c0_i32_6 : i32
      %c1_i32_7 = arith.constant 1 : i32
      %14 = arith.select %13, %c1_i32_7, %c2_i32 : i32
      %15 = arith.remsi %arg0, %14 : i32
      %c0_i32_8 = arith.constant 0 : i32
      %16 = arith.cmpi ne, %15, %c0_i32_8 : i32
      %c0_i32_9 = arith.constant 0 : i32
      %17 = arith.cmpi slt, %15, %c0_i32_9 : i32
      %c0_i32_10 = arith.constant 0 : i32
      %18 = arith.cmpi slt, %14, %c0_i32_10 : i32
      %19 = arith.xori %17, %18 : i1
      %20 = arith.andi %19, %16 : i1
      %21 = arith.addi %15, %14 : i32
      %22 = arith.select %20, %21, %15 : i32
      %c0_i32_11 = arith.constant 0 : i32
      %23 = arith.cmpi eq, %22, %c0_i32_11 : i32
      %24 = arith.extui %23 : i1 to i32
      %c0_i32_12 = arith.constant 0 : i32
      %25 = arith.cmpi ne, %24, %c0_i32_12 : i32
      scf.if %25 {
        %c0_15 = arith.constant 0 : index
        %c0_16 = arith.constant 0 : index
        %c0_17 = arith.constant 0 : index
        %29 = vector.load %arg7[%c0_15, %c0_16, %c0_17] : memref<2x16x128xf32, #tpu.memory_space<vmem>>, vector<1x16x128xf32>
        %30 = vector.shape_cast %29 : vector<1x16x128xf32> to vector<16x128xf32>
        %31 = arith.index_cast %1 : i32 to index
        %c0_18 = arith.constant 0 : index
        %32 = vector.load %arg3[%31, %c0_18] : memref<16x16xf32, #tpu.memory_space<vmem>>, vector<16x16xf32>
        %cst = arith.constant dense<0.000000e+00> : vector<16x128xf32>
        %33 = tpu.matmul %32, %30, %cst {dimension_numbers = #tpu.dot_dimension_numbers<[1], [0], [0], [1], [0, 0, 1, 1], [], []>} : vector<16x16xf32>, vector<16x128xf32>, vector<16x128xf32> -> vector<16x128xf32>
        %c1 = arith.constant 1 : index
        %34 = arith.index_cast %1 : i32 to index
        %c0_19 = arith.constant 0 : index
        %35 = vector.load %arg7[%c1, %34, %c0_19] : memref<2x16x128xf32, #tpu.memory_space<vmem>>, vector<1x16x128xf32>
        %36 = vector.shape_cast %35 : vector<1x16x128xf32> to vector<16x128xf32>
        %37 = vector.shape_cast %33 : vector<16x128xf32> to vector<1x16x128xf32>
        tpu.vector_store %arg7[%c1, %34, %c0_19], %37 {strides = array<i32>} : memref<2x16x128xf32, #tpu.memory_space<vmem>>, vector<1x16x128xf32>,
        %38 = arith.index_cast %1 : i32 to index
        %c0_20 = arith.constant 0 : index
        %39 = vector.load %arg6[%38, %c0_20] : memref<16x128xf32, #tpu.memory_space<vmem>>, vector<16x128xf32>
        %cst_21 = arith.constant dense<0.000000e+00> : vector<16x128xf32>
        %40 = tpu.matmul %33, %3, %cst_21 {dimension_numbers = #tpu.dot_dimension_numbers<[1], [0], [0], [1], [0, 0, 1, 1], [], []>} : vector<16x128xf32>, vector<128x128xf32>, vector<16x128xf32> -> vector<16x128xf32>
        %41 = arith.addf %39, %40 : vector<16x128xf32>
        %42 = arith.index_cast %1 : i32 to index
        %c0_22 = arith.constant 0 : index
        %43 = vector.load %arg6[%42, %c0_22] : memref<16x128xf32, #tpu.memory_space<vmem>>, vector<16x128xf32>
        tpu.vector_store %arg6[%42, %c0_22], %41 {strides = array<i32>} : memref<16x128xf32, #tpu.memory_space<vmem>>, vector<16x128xf32>,
      } else {
      }
      %c1_i32_13 = arith.constant 1 : i32
      %26 = arith.cmpi eq, %22, %c1_i32_13 : i32
      %27 = arith.extui %26 : i1 to i32
      %c0_i32_14 = arith.constant 0 : i32
      %28 = arith.cmpi ne, %27, %c0_i32_14 : i32
      scf.if %28 {
        %c1 = arith.constant 1 : index
        %c0_15 = arith.constant 0 : index
        %c0_16 = arith.constant 0 : index
        %29 = vector.load %arg7[%c1, %c0_15, %c0_16] : memref<2x16x128xf32, #tpu.memory_space<vmem>>, vector<1x16x128xf32>
        %30 = vector.shape_cast %29 : vector<1x16x128xf32> to vector<16x128xf32>
        %31 = arith.index_cast %1 : i32 to index
        %c0_17 = arith.constant 0 : index
        %32 = vector.load %arg3[%31, %c0_17] : memref<16x16xf32, #tpu.memory_space<vmem>>, vector<16x16xf32>
        %cst = arith.constant dense<0.000000e+00> : vector<16x128xf32>
        %33 = tpu.matmul %32, %30, %cst {dimension_numbers = #tpu.dot_dimension_numbers<[1], [0], [0], [1], [0, 0, 1, 1], [], []>} : vector<16x16xf32>, vector<16x128xf32>, vector<16x128xf32> -> vector<16x128xf32>
        %c0_18 = arith.constant 0 : index
        %34 = arith.index_cast %1 : i32 to index
        %c0_19 = arith.constant 0 : index
        %35 = vector.load %arg7[%c0_18, %34, %c0_19] : memref<2x16x128xf32, #tpu.memory_space<vmem>>, vector<1x16x128xf32>
        %36 = vector.shape_cast %35 : vector<1x16x128xf32> to vector<16x128xf32>
        %37 = vector.shape_cast %33 : vector<16x128xf32> to vector<1x16x128xf32>
        tpu.vector_store %arg7[%c0_18, %34, %c0_19], %37 {strides = array<i32>} : memref<2x16x128xf32, #tpu.memory_space<vmem>>, vector<1x16x128xf32>,
        %38 = arith.index_cast %1 : i32 to index
        %c0_20 = arith.constant 0 : index
        %39 = vector.load %arg6[%38, %c0_20] : memref<16x128xf32, #tpu.memory_space<vmem>>, vector<16x128xf32>
        %cst_21 = arith.constant dense<0.000000e+00> : vector<16x128xf32>
        %40 = tpu.matmul %33, %3, %cst_21 {dimension_numbers = #tpu.dot_dimension_numbers<[1], [0], [0], [1], [0, 0, 1, 1], [], []>} : vector<16x128xf32>, vector<128x128xf32>, vector<16x128xf32> -> vector<16x128xf32>
        %41 = arith.addf %39, %40 : vector<16x128xf32>
        %42 = arith.index_cast %1 : i32 to index
        %c0_22 = arith.constant 0 : index
        %43 = vector.load %arg6[%42, %c0_22] : memref<16x128xf32, #tpu.memory_space<vmem>>, vector<16x128xf32>
        tpu.vector_store %arg6[%42, %c0_22], %41 {strides = array<i32>} : memref<16x128xf32, #tpu.memory_space<vmem>>, vector<16x128xf32>,
      } else {
      }
    } else {
    }
    return
  }
  func.func @transform_0(%arg0: i32, %arg1: i32) -> (i32, i32) {
    %c0_i32 = arith.constant 0 : i32
    %c0_i32_0 = arith.constant 0 : i32
    %c0_i32_1 = arith.constant 0 : i32
    return %c0_i32, %c0_i32_0 : i32, i32
  }
  func.func @transform_1(%arg0: i32, %arg1: i32) -> (i32, i32) {
    %c0_i32 = arith.constant 0 : i32
    %c0_i32_0 = arith.constant 0 : i32
    %c0_i32_1 = arith.constant 0 : i32
    return %c0_i32, %c0_i32_0 : i32, i32
  }
  func.func @transform_2(%arg0: i32, %arg1: i32) -> (i32, i32, i32) {
    %c0_i32 = arith.constant 0 : i32
    %c0_i32_0 = arith.constant 0 : i32
    %c0_i32_1 = arith.constant 0 : i32
    return %arg0, %c0_i32, %c0_i32_0 : i32, i32, i32
  }
  func.func @transform_3(%arg0: i32, %arg1: i32) -> (i32, i32) {
    %c0_i32 = arith.constant 0 : i32
    %c0_i32_0 = arith.constant 0 : i32
    %c0_i32_1 = arith.constant 0 : i32
    return %c0_i32, %c0_i32_0 : i32, i32
  }
  func.func @transform_4(%arg0: i32, %arg1: i32) -> (i32, i32) {
    %c0_i32 = arith.constant 0 : i32
    %c0_i32_0 = arith.constant 0 : i32
    %c0_i32_1 = arith.constant 0 : i32
    return %c0_i32, %c0_i32_0 : i32, i32
  }
}

</mosaic_0001>

<llo_original>
// kernel: tpu_custom_call.1
$region0: #{tpu_custom_call.1}
  #allocation0 [shape = 'u32[]', space=smem, size = 0x4, offset = 0x4, fixed_abs, tag = 'smem constant byte address 0x4 - core index']
  #allocation1 [shape = 'u32[144,128]{1,0:T(1,128)}', space=vmem, size = 0x12000, scoped, tag = 'internal scratch']
  #allocation2 [shape = 'f32[2,16,128]{2,1,0:T(8,128)}', space=vmem, size = 0x4000, scoped, tag = 'scratch operand']
  %s0 = inlined_call_operand.hbm [shape: f32[16,128], index: 0, kind: input, shape index: {}]
  %s1 = inlined_call_operand.hbm [shape: f32[16,16], index: 1, kind: input, shape index: {}]
  %s2 = inlined_call_operand.hbm [shape: f32[3,128,128], index: 2, kind: input, shape index: {}]
  %s3 = inlined_call_operand.vmem [shape: f32[1,128], index: 3, kind: input, shape index: {}]
  %s4 = inlined_call_operand.hbm [shape: f32[16,128], index: 4, kind: output, shape index: {}]
  %s5 = sld [smem:[#allocation0]]
  $region81: #{tpu_custom_call.1} parent=0
    _
  %s7 = ssub.s32 1, %s5
  %s8 = scalar_select 0, %s7, %s5
  $region1: #{tpu_custom_call.1} parent=0
    #allocation3 [shape = 'u8[8192]{0}', space=vmem, size = 0x2000, scoped, tag = 'input window, operand 0, single buffered']
    #allocation4 [shape = 's32[2]{0}', space=sflag, size = 0x8, scoped, tag = 'scoped memory for tpu_custom_call.1']
    #allocation5 [shape = 's32[2]{0}', space=sflag, size = 0x8, scoped, tag = 'scoped memory for tpu_custom_call.1']
    #allocation6 [shape = 'u8[8192]{0}', space=vmem, size = 0x2000, scoped, tag = 'input window, operand 1, single buffered']
    #allocation7 [shape = 's32[1]{0}', space=sflag, size = 0x4, scoped, tag = 'scoped memory for tpu_custom_call.1']
    #allocation8 [shape = 'u8[131072]{0}', space=vmem, size = 0x20000, scoped, tag = 'input window, operand 2']
    #allocation9 [shape = 'u8[8192]{0}', space=vmem, size = 0x2000, scoped, tag = 'output window, operand 0, single buffered']
    %9 = vsyncpa [#allocation4], 0
    %10 = vsyncpa [#allocation7], 0
    %11 = vsyncpa [#allocation5], 0
    loop: start=0, step=1, limit=5
    $region2: #{tpu_custom_call.1} parent=1 // loop_pre_header
      _
    $region3: #{tpu_custom_call.1} parent=1 // loop_header
      %s13 = sphi 0, %s17
      %p14 = scmp.ge.s32.totalorder %s13, 5
      %s20 = sphi 0, %s32
      %s21 = sphi 0, %s28
      %s22 = sphi 0, %s20
      %s23 = sphi 0, %s21
      %s24 = sphi 0, %s22
      %s25 = sphi 0, %s23
      %s33 = sphi 0, %s33
      %s35 = sphi 0, %s33
      %s36 = sphi 0, %s35
      %s50 = sphi 0, %s36
      %s54 = sphi 0, %s54
      %s56 = sphi 0, %s54
      %s57 = sphi 0, %s56
      %s71 = sphi 0, %s57
      %s77 = sphi 0, %s79
      %s80 = sphi 0, %s77
      %s81 = sphi 0, %s80
      %s97 = sphi 0, %s81
      %s101 = sphi 0, %s101
      %s103 = sphi 0, %s101
      %s104 = sphi 0, %s103
      %s118 = sphi 0, %s104
      %s122 = sphi 0, %s122
      %s124 = sphi 0, %s122
      %s125 = sphi 0, %s124
      %s139 = sphi 0, %s125
    $region4: #{tpu_custom_call.1} parent=1 // loop_header_branch
      %16 = sbr.rel (%p14) target = $region8
    $region5: #{tpu_custom_call.1} parent=1 // loop_body
      %s18 = ssub.s32 %s13, 1
      %s19 = ssub.s32 %s13, 2
      %s26 = sadd.s32 1, %s21
      %p27 = scmp.ge.s32.totalorder %s26, 1
      %s28 = scalar_select %p27, 0, %s26
      %s29 = sadd.s32 1, %s20
      %s30 = scalar_select %p27, %s29, %s20
      %p31 = scmp.ge.s32.totalorder %s30, 3
      %s32 = scalar_select %p31, 0, %s30
      %s34 = sadd.s32 %s33, 1
      %p37 = scmp.eq.s32.totalorder %s13, 2
      %p38 = scmp.ne.s32.totalorder %s33, %s35
      %p39 = scmp.eq.s32.totalorder %s13, 0
      %p40 = por %p38, %p39
      %p41 = scmp.ne.s32.totalorder %s33, %s35
      %p42 = scmp.eq.s32.totalorder %s18, 2
      %p43 = por %p41, %p42
      %p44 = scmp.ne.s32.totalorder %s35, %s36
      %p45 = scmp.eq.s32.totalorder %s18, 0
      %p46 = por %p44, %p45
      %p47 = scmp.ne.s32.totalorder %s35, %s36
      %p48 = scmp.eq.s32.totalorder %s19, 2
      %p49 = por %p47, %p48
      %p51 = scmp.ne.s32.totalorder %s36, %s50
      %p52 = scmp.eq.s32.totalorder %s19, 0
      %p53 = por %p51, %p52
      %s55 = sadd.s32 %s54, 1
      %p58 = scmp.eq.s32.totalorder %s13, 2
      %p59 = scmp.ne.s32.totalorder %s54, %s56
      %p60 = scmp.eq.s32.totalorder %s13, 0
      %p61 = por %p59, %p60
      %p62 = scmp.ne.s32.totalorder %s54, %s56
      %p63 = scmp.eq.s32.totalorder %s18, 2
      %p64 = por %p62, %p63
      %p65 = scmp.ne.s32.totalorder %s56, %s57
      %p66 = scmp.eq.s32.totalorder %s18, 0
      %p67 = por %p65, %p66
      %p68 = scmp.ne.s32.totalorder %s56, %s57
      %p69 = scmp.eq.s32.totalorder %s19, 2
      %p70 = por %p68, %p69
      %p72 = scmp.ne.s32.totalorder %s57, %s71
      %p73 = scmp.eq.s32.totalorder %s19, 0
      %p74 = por %p72, %p73
      %s75 = ssub.s32 %s20, %s32
      %p76 = scmp.eq.s32.totalorder %s75, 0
      %s78 = sadd.s32 %s77, 1
      %s79 = scalar_select %p76, %s77, %s78
      %p82 = pneg %p76
      %p83 = scmp.eq.s32.totalorder %s13, 2
      %p84 = por %p82, %p83
      %p85 = scmp.ne.s32.totalorder %s77, %s80
      %p86 = scmp.eq.s32.totalorder %s13, 0
      %p87 = por %p85, %p86
      %p88 = scmp.ne.s32.totalorder %s77, %s80
      %p89 = scmp.eq.s32.totalorder %s18, 2
      %p90 = por %p88, %p89
      %p91 = scmp.ne.s32.totalorder %s80, %s81
      %p92 = scmp.eq.s32.totalorder %s18, 0
      %p93 = por %p91, %p92
      %p94 = scmp.ne.s32.totalorder %s80, %s81
      %p95 = scmp.eq.s32.totalorder %s19, 2
      %p96 = por %p94, %p95
      %p98 = scmp.ne.s32.totalorder %s81, %s97
      %p99 = scmp.eq.s32.totalorder %s19, 0
      %p100 = por %p98, %p99
      %s102 = sadd.s32 %s101, 1
      %p105 = scmp.eq.s32.totalorder %s13, 2
      %p106 = scmp.ne.s32.totalorder %s101, %s103
      %p107 = scmp.eq.s32.totalorder %s13, 0
      %p108 = por %p106, %p107
      %p109 = scmp.ne.s32.totalorder %s101, %s103
      %p110 = scmp.eq.s32.totalorder %s18, 2
      %p111 = por %p109, %p110
      %p112 = scmp.ne.s32.totalorder %s103, %s104
      %p113 = scmp.eq.s32.totalorder %s18, 0
      %p114 = por %p112, %p113
      %p115 = scmp.ne.s32.totalorder %s103, %s104
      %p116 = scmp.eq.s32.totalorder %s19, 2
      %p117 = por %p115, %p116
      %p119 = scmp.ne.s32.totalorder %s104, %s118
      %p120 = scmp.eq.s32.totalorder %s19, 0
      %p121 = por %p119, %p120
      %s123 = sadd.s32 %s122, 1
      %p126 = scmp.eq.s32.totalorder %s13, 2
      %p127 = scmp.ne.s32.totalorder %s122, %s124
      %p128 = scmp.eq.s32.totalorder %s13, 0
      %p129 = por %p127, %p128
      %p130 = scmp.ne.s32.totalorder %s122, %s124
      %p131 = scmp.eq.s32.totalorder %s18, 2
      %p132 = por %p130, %p131
      %p133 = scmp.ne.s32.totalorder %s124, %s125
      %p134 = scmp.eq.s32.totalorder %s18, 0
      %p135 = por %p133, %p134
      %p136 = scmp.ne.s32.totalorder %s124, %s125
      %p137 = scmp.eq.s32.totalorder %s19, 2
      %p138 = por %p136, %p137
      %p140 = scmp.ne.s32.totalorder %s125, %s139
      %p141 = scmp.eq.s32.totalorder %s19, 0
      %p142 = por %p140, %p141
      %p143 = scmp.le.s32.totalorder 1, %s13
      %p144 = scmp.lt.s32.totalorder %s13, 4
      %p145 = pnand %p143, %p144
      %p146 = pneg %p145
      // Predicated region
      $region9: #{tpu_custom_call.1} parent=5 // pred_check
        _
      $region10: #{tpu_custom_call.1} parent=5 // pred_check_branch
        %148 = sbr.rel (%p145) target = $region12
      $region11: #{tpu_custom_call.1} parent=5 // pred_region
        %s149 = ssub.s32 %s13, 1
        // Predicated region
        $region13: #{tpu_custom_call.1} parent=11 // pred_check
          %p150 = pneg %p46
        $region14: #{tpu_custom_call.1} parent=11 // pred_check_branch
          %152 = sbr.rel (%p150) target = $region16
        $region15: #{tpu_custom_call.1} parent=11 // pred_region
          %s154 = ssub.s32 256, 256
          %155 = vsyncadd [#allocation4], %s154
          %s156 = sshll.u32 [#allocation3], 4
          %s157 = int_to_ptr.vmem [resolvable:$true] %s156
          %162 = dma.hbm_to_vmem [thread:$0]  %s0, 256, %s157, [#allocation4], 128, 128, 8
        $region16: #{tpu_custom_call.1} parent=11 // pred_fallthru
          _
        // Predicated region
        $region17: #{tpu_custom_call.1} parent=11 // pred_check
          %p163 = pneg %p67
        $region18: #{tpu_custom_call.1} parent=11 // pred_check_branch
          %165 = sbr.rel (%p163) target = $region20
        $region19: #{tpu_custom_call.1} parent=11 // pred_region
          %s167 = ssub.s32 256, 256
          %168 = vsyncadd [#allocation7], %s167
          %s169 = sshll.u32 [#allocation6], 4
          %s170 = int_to_ptr.vmem [resolvable:$true] %s169
          %175 = dma.hbm_to_vmem [thread:$0]  %s1, 256, %s170, [#allocation7], 128, 128, 8
        $region20: #{tpu_custom_call.1} parent=11 // pred_fallthru
          _
        // Predicated region
        $region21: #{tpu_custom_call.1} parent=11 // pred_check
          %p176 = pneg %p114
        $region22: #{tpu_custom_call.1} parent=11 // pred_check_branch
          %178 = sbr.rel (%p176) target = $region24
        $region23: #{tpu_custom_call.1} parent=11 // pred_region
          _
        $region24: #{tpu_custom_call.1} parent=11 // pred_fallthru
          _
      $region12: #{tpu_custom_call.1} parent=5 // pred_fallthru
        _
      %p179 = scmp.lt.s32.totalorder %s13, 3
      // Predicated region
      $region25: #{tpu_custom_call.1} parent=5 // pred_check
        %p180 = pneg %p179
      $region26: #{tpu_custom_call.1} parent=5 // pred_check_branch
        %182 = sbr.rel (%p180) target = $region28
      $region27: #{tpu_custom_call.1} parent=5 // pred_region
        // Predicated region
        $region29: #{tpu_custom_call.1} parent=27 // pred_check
          %p183 = pneg %p87
        $region30: #{tpu_custom_call.1} parent=27 // pred_check_branch
          %185 = sbr.rel (%p183) target = $region32
        $region31: #{tpu_custom_call.1} parent=27 // pred_region
          %s186 = sand.u32 %s13, 1
          %s187 = scalar_lea.sflag [#allocation4], %s186
          %s188 = sand.u32 %s77, 1
          %s189 = smul.addr %s188, 128
          %s190 = scalar_lea.vmem [#allocation8], %s189
          %s192 = ssub.s32 2048, 2048
          %193 = vsyncadd %s187, %s192
          %s194 = smul.addr %s20, 16
          %s195 = smul.addr %s194, 128
          %s196 = scalar_lea.hbm %s2, %s195
          %s197 = sshll.u32 %s190, 4
          %s198 = int_to_ptr.vmem [resolvable:$true] %s197
          %203 = dma.hbm_to_vmem [thread:$0]  %s196, 2048, %s198, %s187, 128, 128, 8
        $region32: #{tpu_custom_call.1} parent=27 // pred_fallthru
          _
      $region28: #{tpu_custom_call.1} parent=5 // pred_fallthru
        _
      %p204 = scmp.le.s32.totalorder 1, %s13
      %p205 = scmp.lt.s32.totalorder %s13, 4
      %p206 = pnand %p204, %p205
      %p207 = pneg %p206
      // Predicated region
      $region33: #{tpu_custom_call.1} parent=5 // pred_check
        _
      $region34: #{tpu_custom_call.1} parent=5 // pred_check_branch
        %209 = sbr.rel (%p206) target = $region36
      $region35: #{tpu_custom_call.1} parent=5 // pred_region
        %s210 = ssub.s32 %s13, 1
        // Predicated region
        $region37: #{tpu_custom_call.1} parent=35 // pred_check
          %p211 = pneg %p46
        $region38: #{tpu_custom_call.1} parent=35 // pred_check_branch
          %213 = sbr.rel (%p211) target = $region40
        $region39: #{tpu_custom_call.1} parent=35 // pred_region
          %214 = dma.done [#allocation4], 256
        $region40: #{tpu_custom_call.1} parent=35 // pred_fallthru
          _
        // Predicated region
        $region41: #{tpu_custom_call.1} parent=35 // pred_check
          %p215 = pneg %p67
        $region42: #{tpu_custom_call.1} parent=35 // pred_check_branch
          %217 = sbr.rel (%p215) target = $region44
        $region43: #{tpu_custom_call.1} parent=35 // pred_region
          %218 = dma.done [#allocation7], 256
        $region44: #{tpu_custom_call.1} parent=35 // pred_fallthru
          _
        %s219 = sand.u32 %s18, 1
        %s220 = scalar_lea.sflag [#allocation4], %s219
        %s221 = sand.u32 %s80, 1
        %s222 = smul.addr %s221, 128
        %s223 = scalar_lea.vmem [#allocation8], %s222
        // Predicated region
        $region45: #{tpu_custom_call.1} parent=35 // pred_check
          %p224 = pneg %p93
        $region46: #{tpu_custom_call.1} parent=35 // pred_check_branch
          %226 = sbr.rel (%p224) target = $region48
        $region47: #{tpu_custom_call.1} parent=35 // pred_region
          %227 = dma.done %s220, 2048
        $region48: #{tpu_custom_call.1} parent=35 // pred_fallthru
          _
        %p228 = pneg %p46
        %p229 = pneg %p43
        %p230 = pneg %p67
        %p231 = pneg %p64
        %s232 = sand.u32 %s18, 1
        %s233 = scalar_lea.sflag [#allocation4], %s232
        %s234 = sand.u32 %s80, 1
        %s235 = smul.addr %s234, 128
        %s236 = scalar_lea.vmem [#allocation8], %s235
        %p237 = pneg %p93
        %p238 = pneg %p90
        %p239 = pneg %p114
        %p240 = pneg %p111
        %p241 = pneg %p135
        %p242 = pneg %p132
        %s243 = smul.u32 %s23, 16
        %v244 = vld [vmem:[%s223] sm:$0xff]
        %v245 = vld [vmem:[%s223 + $0x8] sm:$0xff]
        %v246 = vld [vmem:[%s223 + $0x10] sm:$0xff]
        %v247 = vld [vmem:[%s223 + $0x18] sm:$0xff]
        %v248 = vld [vmem:[%s223 + $0x20] sm:$0xff]
        %v249 = vld [vmem:[%s223 + $0x28] sm:$0xff]
        %v250 = vld [vmem:[%s223 + $0x30] sm:$0xff]
        %v251 = vld [vmem:[%s223 + $0x38] sm:$0xff]
        %v252 = vld [vmem:[%s223 + $0x40] sm:$0xff]
        %v253 = vld [vmem:[%s223 + $0x48] sm:$0xff]
        %v254 = vld [vmem:[%s223 + $0x50] sm:$0xff]
        %v255 = vld [vmem:[%s223 + $0x58] sm:$0xff]
        %v256 = vld [vmem:[%s223 + $0x60] sm:$0xff]
        %v257 = vld [vmem:[%s223 + $0x68] sm:$0xff]
        %v258 = vld [vmem:[%s223 + $0x70] sm:$0xff]
        %v259 = vld [vmem:[%s223 + $0x78] sm:$0xff]
        %p260 = scmp.eq.s32.totalorder %s22, 0
        // Predicated region
        $region49: #{tpu_custom_call.1} parent=35 // pred_check
          %p261 = pneg %p260
        $region50: #{tpu_custom_call.1} parent=35 // pred_check_branch
          %263 = sbr.rel (%p261) target = $region52
        $region51: #{tpu_custom_call.1} parent=35 // pred_region
          %s264 = scalar_lea.vmem [#allocation3], %s243
          %v265 = vld [vmem:[%s264] sm:$0xff]
          %v266 = vld [vmem:[%s264 + $0x8] sm:$0xff]
          %v267 = vld [vmem:[%s3] sm:$0x1]
          %v269 = vlaneseq
          %v270 = vshrl.u32 %v269, 7
          %v271 = vsub.s32 0, %v270
          %v272 = vrot.slane %v267, %v271
          %274 = vmatprep.subr.mxu0 0.0
          %275 = vmatpush1.msra.mxu0 %v244
          %276 = vmatprep.subr.mxu0 0.0
          %277 = vmatpush1.msra.mxu0 %v245
          %278 = vmatprep.subr.mxu0 0.0
          %279 = vmatpush1.msra.mxu0 %v246
          %280 = vmatprep.subr.mxu0 0.0
          %281 = vmatpush1.msra.mxu0 %v247
          %282 = vmatprep.subr.mxu0 0.0
          %283 = vmatpush1.msra.mxu0 %v248
          %284 = vmatprep.subr.mxu0 0.0
          %285 = vmatpush1.msra.mxu0 %v249
          %286 = vmatprep.subr.mxu0 0.0
          %287 = vmatpush1.msra.mxu0 %v250
          %288 = vmatprep.subr.mxu0 0.0
          %289 = vmatpush1.msra.mxu0 %v251
          %290 = vmatprep.subr.mxu0 0.0
          %291 = vmatpush1.msra.mxu0 %v252
          %292 = vmatprep.subr.mxu0 0.0
          %293 = vmatpush1.msra.mxu0 %v253
          %294 = vmatprep.subr.mxu0 0.0
          %295 = vmatpush1.msra.mxu0 %v254
          %296 = vmatprep.subr.mxu0 0.0
          %297 = vmatpush1.msra.mxu0 %v255
          %298 = vmatprep.subr.mxu0 0.0
          %299 = vmatpush1.msra.mxu0 %v256
          %300 = vmatprep.subr.mxu0 0.0
          %301 = vmatpush1.msra.mxu0 %v257
          %302 = vmatprep.subr.mxu0 0.0
          %303 = vmatpush1.msra.mxu0 %v258
          %304 = vmatprep.subr.mxu0 0.0
          %305 = vmatpush1.msra.mxu0 %v259
          %306 = vmatprep.subr.mxu0 0.0
          %307 = vmatpush1.msra.mxu0 0.0
          %308 = vmatprep.subr.mxu0 0.0
          %309 = vmatpush1.msra.mxu0 0.0
          %310 = vmatprep.subr.mxu0 0.0
          %311 = vmatpush1.msra.mxu0 0.0
          %312 = vmatprep.subr.mxu0 0.0
          %313 = vmatpush1.msra.mxu0 0.0
          %314 = vmatprep.subr.mxu0 0.0
          %315 = vmatpush1.msra.mxu0 0.0
          %316 = vmatprep.subr.mxu0 0.0
          %317 = vmatpush1.msra.mxu0 0.0
          %318 = vmatprep.subr.mxu0 0.0
          %319 = vmatpush1.msra.mxu0 0.0
          %320 = vmatprep.subr.mxu0 0.0
          %321 = vmatpush1.msra.mxu0 0.0
          %322 = vmatprep.subr.mxu0 0.0
          %323 = vmatpush1.msra.mxu0 0.0
          %324 = vmatprep.subr.mxu0 0.0
          %325 = vmatpush1.msra.mxu0 0.0
          %326 = vmatprep.subr.mxu0 0.0
          %327 = vmatpush1.msra.mxu0 0.0
          %328 = vmatprep.subr.mxu0 0.0
          %329 = vmatpush1.msra.mxu0 0.0
          %330 = vmatprep.subr.mxu0 0.0
          %331 = vmatpush1.msra.mxu0 0.0
          %332 = vmatprep.subr.mxu0 0.0
          %333 = vmatpush1.msra.mxu0 0.0
          %334 = vmatprep.subr.mxu0 0.0
          %335 = vmatpush1.msra.mxu0 0.0
          %336 = vmatprep.subr.mxu0 0.0
          %337 = vmatpush1.msra.mxu0 0.0
          %338 = vmatprep.mubr.f32.mxu0 0.0
          %339 = vmatmul.mubr.f32.gmra.mrb[0].mxu0 %v265
          %v340 = vpop.f32.mrb[0].mxu0
          %v341 = vadd.f32 %v272, %v340
          %v342 = vpop.f32.mrb[0].mxu0
          %343 = vmatprep.mubr.f32.mxu0 0.0
          %344 = vmatmul.mubr.f32.gmra.mrb[0].mxu0 %v266
          %v345 = vpop.f32.mrb[0].mxu0
          %v346 = vadd.f32 %v272, %v345
          %v347 = vpop.f32.mrb[0].mxu0
          %348 = vdwg.mxu0
          %s349 = scalar_lea.vmem [#allocation9], %s243
          %350 = vst [vmem:[%s349] sm:$0xff] %v341
          %351 = vst [vmem:[%s349 + $0x8] sm:$0xff] %v346
        $region52: #{tpu_custom_call.1} parent=35 // pred_fallthru
          _
        %p352 = scmp.eq.s32.totalorder %s22, 1
        // Predicated region
        $region53: #{tpu_custom_call.1} parent=35 // pred_check
          %p353 = pneg %p352
        $region54: #{tpu_custom_call.1} parent=35 // pred_check_branch
          %355 = sbr.rel (%p353) target = $region56
        $region55: #{tpu_custom_call.1} parent=35 // pred_region
          %v356 = vld [vmem:[#allocation3] sm:$0xff]
          %v357 = vld [vmem:[#allocation3 + $0x8] sm:$0xff]
          %s358 = scalar_lea.vmem [#allocation6], %s243
          %v359 = vld [vmem:[%s358] sm:$0xff]
          %v360 = vld [vmem:[%s358 + $0x8] sm:$0xff]
          %vm361 = vcmask 130048
          %v363 = vsel %vm361, %v359, 0
          %v366 = vsel %vm361, %v360, 0
          %368 = vmatprep.subr.mxu0 0.0
          %369 = vmatpush1.msra.mxu0 %v356
          %370 = vmatprep.subr.mxu0 0.0
          %371 = vmatpush1.msra.mxu0 %v357
          %372 = vmatprep.subr.mxu0 0.0
          %373 = vmatpush1.msra.mxu0 0.0
          %374 = vmatprep.subr.mxu0 0.0
          %375 = vmatpush1.msra.mxu0 0.0
          %376 = vmatprep.subr.mxu0 0.0
          %377 = vmatpush1.msra.mxu0 0.0
          %378 = vmatprep.subr.mxu0 0.0
          %379 = vmatpush1.msra.mxu0 0.0
          %380 = vmatprep.subr.mxu0 0.0
          %381 = vmatpush1.msra.mxu0 0.0
          %382 = vmatprep.subr.mxu0 0.0
          %383 = vmatpush1.msra.mxu0 0.0
          %384 = vmatprep.subr.mxu0 0.0
          %385 = vmatpush1.msra.mxu0 0.0
          %386 = vmatprep.subr.mxu0 0.0
          %387 = vmatpush1.msra.mxu0 0.0
          %388 = vmatprep.subr.mxu0 0.0
          %389 = vmatpush1.msra.mxu0 0.0
          %390 = vmatprep.subr.mxu0 0.0
          %391 = vmatpush1.msra.mxu0 0.0
          %392 = vmatprep.subr.mxu0 0.0
          %393 = vmatpush1.msra.mxu0 0.0
          %394 = vmatprep.subr.mxu0 0.0
          %395 = vmatpush1.msra.mxu0 0.0
          %396 = vmatprep.subr.mxu0 0.0
          %397 = vmatpush1.msra.mxu0 0.0
          %398 = vmatprep.subr.mxu0 0.0
          %399 = vmatpush1.msra.mxu0 0.0
          %400 = vmatprep.subr.mxu0 0.0
          %401 = vmatpush1.msra.mxu0 0.0
          %402 = vmatprep.subr.mxu0 0.0
          %403 = vmatpush1.msra.mxu0 0.0
          %404 = vmatprep.subr.mxu0 0.0
          %405 = vmatpush1.msra.mxu0 0.0
          %406 = vmatprep.subr.mxu0 0.0
          %407 = vmatpush1.msra.mxu0 0.0
          %408 = vmatprep.subr.mxu0 0.0
          %409 = vmatpush1.msra.mxu0 0.0
          %410 = vmatprep.subr.mxu0 0.0
          %411 = vmatpush1.msra.mxu0 0.0
          %412 = vmatprep.subr.mxu0 0.0
          %413 = vmatpush1.msra.mxu0 0.0
          %414 = vmatprep.subr.mxu0 0.0
          %415 = vmatpush1.msra.mxu0 0.0
          %416 = vmatprep.subr.mxu0 0.0
          %417 = vmatpush1.msra.mxu0 0.0
          %418 = vmatprep.subr.mxu0 0.0
          %419 = vmatpush1.msra.mxu0 0.0
          %420 = vmatprep.subr.mxu0 0.0
          %421 = vmatpush1.msra.mxu0 0.0
          %422 = vmatprep.subr.mxu0 0.0
          %423 = vmatpush1.msra.mxu0 0.0
          %424 = vmatprep.subr.mxu0 0.0
          %425 = vmatpush1.msra.mxu0 0.0
          %426 = vmatprep.subr.mxu0 0.0
          %427 = vmatpush1.msra.mxu0 0.0
          %428 = vmatprep.subr.mxu0 0.0
          %429 = vmatpush1.msra.mxu0 0.0
          %430 = vmatprep.subr.mxu0 0.0
          %431 = vmatpush1.msra.mxu0 0.0
          %432 = vmatprep.mubr.f32.mxu0 0.0
          %433 = vmatmul.mubr.f32.gmra.mrb[0].mxu0 %v363
          %v434 = vpop.f32.mrb[0].mxu0
          %v435 = vadd.f32 0.0, %v434
          %v436 = vpop.f32.mrb[0].mxu0
          %437 = vmatprep.mubr.f32.mxu0 0.0
          %438 = vmatmul.mubr.f32.gmra.mrb[0].mxu0 %v366
          %v439 = vpop.f32.mrb[0].mxu0
          %v440 = vadd.f32 0.0, %v439
          %v441 = vpop.f32.mrb[0].mxu0
          %442 = vdwg.mxu0
          %s443 = scalar_lea.vmem [#allocation2], %s243
          %444 = vst [vmem:[%s443] sm:$0xff] %v435
          %445 = vst [vmem:[%s443 + $0x8] sm:$0xff] %v440
          %s446 = scalar_lea.vmem [#allocation9], %s243
          %v447 = vld [vmem:[%s446] sm:$0xff]
          %v448 = vld [vmem:[%s446 + $0x8] sm:$0xff]
          %449 = vmatprep.subr.mxu0 0.0
          %450 = vmatpush1.msra.mxu0 %v244
          %451 = vmatprep.subr.mxu0 0.0
          %452 = vmatpush1.msra.mxu0 %v245
          %453 = vmatprep.subr.mxu0 0.0
          %454 = vmatpush1.msra.mxu0 %v246
          %455 = vmatprep.subr.mxu0 0.0
          %456 = vmatpush1.msra.mxu0 %v247
          %457 = vmatprep.subr.mxu0 0.0
          %458 = vmatpush1.msra.mxu0 %v248
          %459 = vmatprep.subr.mxu0 0.0
          %460 = vmatpush1.msra.mxu0 %v249
          %461 = vmatprep.subr.mxu0 0.0
          %462 = vmatpush1.msra.mxu0 %v250
          %463 = vmatprep.subr.mxu0 0.0
          %464 = vmatpush1.msra.mxu0 %v251
          %465 = vmatprep.subr.mxu0 0.0
          %466 = vmatpush1.msra.mxu0 %v252
          %467 = vmatprep.subr.mxu0 0.0
          %468 = vmatpush1.msra.mxu0 %v253
          %469 = vmatprep.subr.mxu0 0.0
          %470 = vmatpush1.msra.mxu0 %v254
          %471 = vmatprep.subr.mxu0 0.0
          %472 = vmatpush1.msra.mxu0 %v255
          %473 = vmatprep.subr.mxu0 0.0
          %474 = vmatpush1.msra.mxu0 %v256
          %475 = vmatprep.subr.mxu0 0.0
          %476 = vmatpush1.msra.mxu0 %v257
          %477 = vmatprep.subr.mxu0 0.0
          %478 = vmatpush1.msra.mxu0 %v258
          %479 = vmatprep.subr.mxu0 0.0
          %480 = vmatpush1.msra.mxu0 %v259
          %481 = vmatprep.subr.mxu0 0.0
          %482 = vmatpush1.msra.mxu0 0.0
          %483 = vmatprep.subr.mxu0 0.0
          %484 = vmatpush1.msra.mxu0 0.0
          %485 = vmatprep.subr.mxu0 0.0
          %486 = vmatpush1.msra.mxu0 0.0
          %487 = vmatprep.subr.mxu0 0.0
          %488 = vmatpush1.msra.mxu0 0.0
          %489 = vmatprep.subr.mxu0 0.0
          %490 = vmatpush1.msra.mxu0 0.0
          %491 = vmatprep.subr.mxu0 0.0
          %492 = vmatpush1.msra.mxu0 0.0
          %493 = vmatprep.subr.mxu0 0.0
          %494 = vmatpush1.msra.mxu0 0.0
          %495 = vmatprep.subr.mxu0 0.0
          %496 = vmatpush1.msra.mxu0 0.0
          %497 = vmatprep.subr.mxu0 0.0
          %498 = vmatpush1.msra.mxu0 0.0
          %499 = vmatprep.subr.mxu0 0.0
          %500 = vmatpush1.msra.mxu0 0.0
          %501 = vmatprep.subr.mxu0 0.0
          %502 = vmatpush1.msra.mxu0 0.0
          %503 = vmatprep.subr.mxu0 0.0
          %504 = vmatpush1.msra.mxu0 0.0
          %505 = vmatprep.subr.mxu0 0.0
          %506 = vmatpush1.msra.mxu0 0.0
          %507 = vmatprep.subr.mxu0 0.0
          %508 = vmatpush1.msra.mxu0 0.0
          %509 = vmatprep.subr.mxu0 0.0
          %510 = vmatpush1.msra.mxu0 0.0
          %511 = vmatprep.subr.mxu0 0.0
          %512 = vmatpush1.msra.mxu0 0.0
          %513 = vmatprep.mubr.f32.mxu0 0.0
          %514 = vmatmul.mubr.f32.gmra.mrb[0].mxu0 %v435
          %v515 = vpop.f32.mrb[0].mxu0
          %v516 = vadd.f32 0.0, %v515
          %v517 = vpop.f32.mrb[0].mxu0
          %518 = vmatprep.mubr.f32.mxu0 0.0
          %519 = vmatmul.mubr.f32.gmra.mrb[0].mxu0 %v440
          %v520 = vpop.f32.mrb[0].mxu0
          %v521 = vadd.f32 0.0, %v520
          %v522 = vpop.f32.mrb[0].mxu0
          %523 = vdwg.mxu0
          %v524 = vadd.f32 %v447, %v516
          %v525 = vadd.f32 %v448, %v521
          %526 = vst [vmem:[%s446] sm:$0xff] %v524
          %527 = vst [vmem:[%s446 + $0x8] sm:$0xff] %v525
        $region56: #{tpu_custom_call.1} parent=35 // pred_fallthru
          _
        %p528 = scmp.gt.s32.totalorder %s22, 1
        // Predicated region
        $region57: #{tpu_custom_call.1} parent=35 // pred_check
          %p529 = pneg %p528
        $region58: #{tpu_custom_call.1} parent=35 // pred_check_branch
          %531 = sbr.rel (%p529) target = $region60
        $region59: #{tpu_custom_call.1} parent=35 // pred_region
          %p532 = scmp.lt.s32.totalorder %s22, 0
          %s533 = ssub.s32 0, %s22
          %s534 = scalar_select %p532, %s533, %s22
          %s535 = sand.u32 %s534, 1
          %s536 = ssub.s32 0, %s535
          %s537 = scalar_select %p532, %s536, %s535
          %p538 = scmp.ne.s32.totalorder %s537, 0
          %p539 = scmp.lt.s32.totalorder %s537, 0
          %p540 = pnand %p539, %p538
          %p541 = pneg %p540
          %s542 = sadd.s32 %s537, 2
          %s543 = scalar_select %p541, %s542, %s537
          %p544 = scmp.eq.s32.totalorder %s543, 0
          // Predicated region
          $region61: #{tpu_custom_call.1} parent=59 // pred_check
            %p545 = pneg %p544
          $region62: #{tpu_custom_call.1} parent=59 // pred_check_branch
            %547 = sbr.rel (%p545) target = $region64
          $region63: #{tpu_custom_call.1} parent=59 // pred_region
            %v548 = vld [vmem:[#allocation2] sm:$0xff]
            %v549 = vld [vmem:[#allocation2 + $0x8] sm:$0xff]
            %s550 = scalar_lea.vmem [#allocation6], %s243
            %v551 = vld [vmem:[%s550] sm:$0xff]
            %v552 = vld [vmem:[%s550 + $0x8] sm:$0xff]
            %vm553 = vcmask 130048
            %v555 = vsel %vm553, %v551, 0
            %v558 = vsel %vm553, %v552, 0
            %560 = vmatprep.subr.mxu0 0.0
            %561 = vmatpush1.msra.mxu0 %v548
            %562 = vmatprep.subr.mxu0 0.0
            %563 = vmatpush1.msra.mxu0 %v549
            %564 = vmatprep.subr.mxu0 0.0
            %565 = vmatpush1.msra.mxu0 0.0
            %566 = vmatprep.subr.mxu0 0.0
            %567 = vmatpush1.msra.mxu0 0.0
            %568 = vmatprep.subr.mxu0 0.0
            %569 = vmatpush1.msra.mxu0 0.0
            %570 = vmatprep.subr.mxu0 0.0
            %571 = vmatpush1.msra.mxu0 0.0
            %572 = vmatprep.subr.mxu0 0.0
            %573 = vmatpush1.msra.mxu0 0.0
            %574 = vmatprep.subr.mxu0 0.0
            %575 = vmatpush1.msra.mxu0 0.0
            %576 = vmatprep.subr.mxu0 0.0
            %577 = vmatpush1.msra.mxu0 0.0
            %578 = vmatprep.subr.mxu0 0.0
            %579 = vmatpush1.msra.mxu0 0.0
            %580 = vmatprep.subr.mxu0 0.0
            %581 = vmatpush1.msra.mxu0 0.0
            %582 = vmatprep.subr.mxu0 0.0
            %583 = vmatpush1.msra.mxu0 0.0
            %584 = vmatprep.subr.mxu0 0.0
            %585 = vmatpush1.msra.mxu0 0.0
            %586 = vmatprep.subr.mxu0 0.0
            %587 = vmatpush1.msra.mxu0 0.0
            %588 = vmatprep.subr.mxu0 0.0
            %589 = vmatpush1.msra.mxu0 0.0
            %590 = vmatprep.subr.mxu0 0.0
            %591 = vmatpush1.msra.mxu0 0.0
            %592 = vmatprep.subr.mxu0 0.0
            %593 = vmatpush1.msra.mxu0 0.0
            %594 = vmatprep.subr.mxu0 0.0
            %595 = vmatpush1.msra.mxu0 0.0
            %596 = vmatprep.subr.mxu0 0.0
            %597 = vmatpush1.msra.mxu0 0.0
            %598 = vmatprep.subr.mxu0 0.0
            %599 = vmatpush1.msra.mxu0 0.0
            %600 = vmatprep.subr.mxu0 0.0
            %601 = vmatpush1.msra.mxu0 0.0
            %602 = vmatprep.subr.mxu0 0.0
            %603 = vmatpush1.msra.mxu0 0.0
            %604 = vmatprep.subr.mxu0 0.0
            %605 = vmatpush1.msra.mxu0 0.0
            %606 = vmatprep.subr.mxu0 0.0
            %607 = vmatpush1.msra.mxu0 0.0
            %608 = vmatprep.subr.mxu0 0.0
            %609 = vmatpush1.msra.mxu0 0.0
            %610 = vmatprep.subr.mxu0 0.0
            %611 = vmatpush1.msra.mxu0 0.0
            %612 = vmatprep.subr.mxu0 0.0
            %613 = vmatpush1.msra.mxu0 0.0
            %614 = vmatprep.subr.mxu0 0.0
            %615 = vmatpush1.msra.mxu0 0.0
            %616 = vmatprep.subr.mxu0 0.0
            %617 = vmatpush1.msra.mxu0 0.0
            %618 = vmatprep.subr.mxu0 0.0
            %619 = vmatpush1.msra.mxu0 0.0
            %620 = vmatprep.subr.mxu0 0.0
            %621 = vmatpush1.msra.mxu0 0.0
            %622 = vmatprep.subr.mxu0 0.0
            %623 = vmatpush1.msra.mxu0 0.0
            %624 = vmatprep.mubr.f32.mxu0 0.0
            %625 = vmatmul.mubr.f32.gmra.mrb[0].mxu0 %v555
            %v626 = vpop.f32.mrb[0].mxu0
            %v627 = vadd.f32 0.0, %v626
            %v628 = vpop.f32.mrb[0].mxu0
            %629 = vmatprep.mubr.f32.mxu0 0.0
            %630 = vmatmul.mubr.f32.gmra.mrb[0].mxu0 %v558
            %v631 = vpop.f32.mrb[0].mxu0
            %v632 = vadd.f32 0.0, %v631
            %v633 = vpop.f32.mrb[0].mxu0
            %634 = vdwg.mxu0
            %s635 = sadd.s32 %s243, 16
            %s636 = scalar_lea.vmem [#allocation2], %s635
            %637 = vst [vmem:[%s636] sm:$0xff] %v627
            %638 = vst [vmem:[%s636 + $0x8] sm:$0xff] %v632
            %s639 = scalar_lea.vmem [#allocation9], %s243
            %v640 = vld [vmem:[%s639] sm:$0xff]
            %v641 = vld [vmem:[%s639 + $0x8] sm:$0xff]
            %642 = vmatprep.subr.mxu0 0.0
            %643 = vmatpush1.msra.mxu0 %v244
            %644 = vmatprep.subr.mxu0 0.0
            %645 = vmatpush1.msra.mxu0 %v245
            %646 = vmatprep.subr.mxu0 0.0
            %647 = vmatpush1.msra.mxu0 %v246
            %648 = vmatprep.subr.mxu0 0.0
            %649 = vmatpush1.msra.mxu0 %v247
            %650 = vmatprep.subr.mxu0 0.0
            %651 = vmatpush1.msra.mxu0 %v248
            %652 = vmatprep.subr.mxu0 0.0
            %653 = vmatpush1.msra.mxu0 %v249
            %654 = vmatprep.subr.mxu0 0.0
            %655 = vmatpush1.msra.mxu0 %v250
            %656 = vmatprep.subr.mxu0 0.0
            %657 = vmatpush1.msra.mxu0 %v251
            %658 = vmatprep.subr.mxu0 0.0
            %659 = vmatpush1.msra.mxu0 %v252
            %660 = vmatprep.subr.mxu0 0.0
            %661 = vmatpush1.msra.mxu0 %v253
            %662 = vmatprep.subr.mxu0 0.0
            %663 = vmatpush1.msra.mxu0 %v254
            %664 = vmatprep.subr.mxu0 0.0
            %665 = vmatpush1.msra.mxu0 %v255
            %666 = vmatprep.subr.mxu0 0.0
            %667 = vmatpush1.msra.mxu0 %v256
            %668 = vmatprep.subr.mxu0 0.0
            %669 = vmatpush1.msra.mxu0 %v257
            %670 = vmatprep.subr.mxu0 0.0
            %671 = vmatpush1.msra.mxu0 %v258
            %672 = vmatprep.subr.mxu0 0.0
            %673 = vmatpush1.msra.mxu0 %v259
            %674 = vmatprep.subr.mxu0 0.0
            %675 = vmatpush1.msra.mxu0 0.0
            %676 = vmatprep.subr.mxu0 0.0
            %677 = vmatpush1.msra.mxu0 0.0
            %678 = vmatprep.subr.mxu0 0.0
            %679 = vmatpush1.msra.mxu0 0.0
            %680 = vmatprep.subr.mxu0 0.0
            %681 = vmatpush1.msra.mxu0 0.0
            %682 = vmatprep.subr.mxu0 0.0
            %683 = vmatpush1.msra.mxu0 0.0
            %684 = vmatprep.subr.mxu0 0.0
            %685 = vmatpush1.msra.mxu0 0.0
            %686 = vmatprep.subr.mxu0 0.0
            %687 = vmatpush1.msra.mxu0 0.0
            %688 = vmatprep.subr.mxu0 0.0
            %689 = vmatpush1.msra.mxu0 0.0
            %690 = vmatprep.subr.mxu0 0.0
            %691 = vmatpush1.msra.mxu0 0.0
            %692 = vmatprep.subr.mxu0 0.0
            %693 = vmatpush1.msra.mxu0 0.0
            %694 = vmatprep.subr.mxu0 0.0
            %695 = vmatpush1.msra.mxu0 0.0
            %696 = vmatprep.subr.mxu0 0.0
            %697 = vmatpush1.msra.mxu0 0.0
            %698 = vmatprep.subr.mxu0 0.0
            %699 = vmatpush1.msra.mxu0 0.0
            %700 = vmatprep.subr.mxu0 0.0
            %701 = vmatpush1.msra.mxu0 0.0
            %702 = vmatprep.subr.mxu0 0.0
            %703 = vmatpush1.msra.mxu0 0.0
            %704 = vmatprep.subr.mxu0 0.0
            %705 = vmatpush1.msra.mxu0 0.0
            %706 = vmatprep.mubr.f32.mxu0 0.0
            %707 = vmatmul.mubr.f32.gmra.mrb[0].mxu0 %v627
            %v708 = vpop.f32.mrb[0].mxu0
            %v709 = vadd.f32 0.0, %v708
            %v710 = vpop.f32.mrb[0].mxu0
            %711 = vmatprep.mubr.f32.mxu0 0.0
            %712 = vmatmul.mubr.f32.gmra.mrb[0].mxu0 %v632
            %v713 = vpop.f32.mrb[0].mxu0
            %v714 = vadd.f32 0.0, %v713
            %v715 = vpop.f32.mrb[0].mxu0
            %716 = vdwg.mxu0
            %v717 = vadd.f32 %v640, %v709
            %v718 = vadd.f32 %v641, %v714
            %719 = vst [vmem:[%s639] sm:$0xff] %v717
            %720 = vst [vmem:[%s639 + $0x8] sm:$0xff] %v718
          $region64: #{tpu_custom_call.1} parent=59 // pred_fallthru
            _
          %p721 = scmp.eq.s32.totalorder %s543, 1
          // Predicated region
          $region65: #{tpu_custom_call.1} parent=59 // pred_check
            %p722 = pneg %p721
          $region66: #{tpu_custom_call.1} parent=59 // pred_check_branch
            %724 = sbr.rel (%p722) target = $region68
          $region67: #{tpu_custom_call.1} parent=59 // pred_region
            %s725 = scalar_lea.vmem [#allocation2], 16
            %v726 = vld [vmem:[%s725] sm:$0xff]
            %v727 = vld [vmem:[%s725 + $0x8] sm:$0xff]
            %s728 = scalar_lea.vmem [#allocation6], %s243
            %v729 = vld [vmem:[%s728] sm:$0xff]
            %v730 = vld [vmem:[%s728 + $0x8] sm:$0xff]
            %vm731 = vcmask 130048
            %v733 = vsel %vm731, %v729, 0
            %v736 = vsel %vm731, %v730, 0
            %738 = vmatprep.subr.mxu0 0.0
            %739 = vmatpush1.msra.mxu0 %v726
            %740 = vmatprep.subr.mxu0 0.0
            %741 = vmatpush1.msra.mxu0 %v727
            %742 = vmatprep.subr.mxu0 0.0
            %743 = vmatpush1.msra.mxu0 0.0
            %744 = vmatprep.subr.mxu0 0.0
            %745 = vmatpush1.msra.mxu0 0.0
            %746 = vmatprep.subr.mxu0 0.0
            %747 = vmatpush1.msra.mxu0 0.0
            %748 = vmatprep.subr.mxu0 0.0
            %749 = vmatpush1.msra.mxu0 0.0
            %750 = vmatprep.subr.mxu0 0.0
            %751 = vmatpush1.msra.mxu0 0.0
            %752 = vmatprep.subr.mxu0 0.0
            %753 = vmatpush1.msra.mxu0 0.0
            %754 = vmatprep.subr.mxu0 0.0
            %755 = vmatpush1.msra.mxu0 0.0
            %756 = vmatprep.subr.mxu0 0.0
            %757 = vmatpush1.msra.mxu0 0.0
            %758 = vmatprep.subr.mxu0 0.0
            %759 = vmatpush1.msra.mxu0 0.0
            %760 = vmatprep.subr.mxu0 0.0
            %761 = vmatpush1.msra.mxu0 0.0
            %762 = vmatprep.subr.mxu0 0.0
            %763 = vmatpush1.msra.mxu0 0.0
            %764 = vmatprep.subr.mxu0 0.0
            %765 = vmatpush1.msra.mxu0 0.0
            %766 = vmatprep.subr.mxu0 0.0
            %767 = vmatpush1.msra.mxu0 0.0
            %768 = vmatprep.subr.mxu0 0.0
            %769 = vmatpush1.msra.mxu0 0.0
            %770 = vmatprep.subr.mxu0 0.0
            %771 = vmatpush1.msra.mxu0 0.0
            %772 = vmatprep.subr.mxu0 0.0
            %773 = vmatpush1.msra.mxu0 0.0
            %774 = vmatprep.subr.mxu0 0.0
            %775 = vmatpush1.msra.mxu0 0.0
            %776 = vmatprep.subr.mxu0 0.0
            %777 = vmatpush1.msra.mxu0 0.0
            %778 = vmatprep.subr.mxu0 0.0
            %779 = vmatpush1.msra.mxu0 0.0
            %780 = vmatprep.subr.mxu0 0.0
            %781 = vmatpush1.msra.mxu0 0.0
            %782 = vmatprep.subr.mxu0 0.0
            %783 = vmatpush1.msra.mxu0 0.0
            %784 = vmatprep.subr.mxu0 0.0
            %785 = vmatpush1.msra.mxu0 0.0
            %786 = vmatprep.subr.mxu0 0.0
            %787 = vmatpush1.msra.mxu0 0.0
            %788 = vmatprep.subr.mxu0 0.0
            %789 = vmatpush1.msra.mxu0 0.0
            %790 = vmatprep.subr.mxu0 0.0
            %791 = vmatpush1.msra.mxu0 0.0
            %792 = vmatprep.subr.mxu0 0.0
            %793 = vmatpush1.msra.mxu0 0.0
            %794 = vmatprep.subr.mxu0 0.0
            %795 = vmatpush1.msra.mxu0 0.0
            %796 = vmatprep.subr.mxu0 0.0
            %797 = vmatpush1.msra.mxu0 0.0
            %798 = vmatprep.subr.mxu0 0.0
            %799 = vmatpush1.msra.mxu0 0.0
            %800 = vmatprep.subr.mxu0 0.0
            %801 = vmatpush1.msra.mxu0 0.0
            %802 = vmatprep.mubr.f32.mxu0 0.0
            %803 = vmatmul.mubr.f32.gmra.mrb[0].mxu0 %v733
            %v804 = vpop.f32.mrb[0].mxu0
            %v805 = vadd.f32 0.0, %v804
            %v806 = vpop.f32.mrb[0].mxu0
            %807 = vmatprep.mubr.f32.mxu0 0.0
            %808 = vmatmul.mubr.f32.gmra.mrb[0].mxu0 %v736
            %v809 = vpop.f32.mrb[0].mxu0
            %v810 = vadd.f32 0.0, %v809
            %v811 = vpop.f32.mrb[0].mxu0
            %812 = vdwg.mxu0
            %s813 = scalar_lea.vmem [#allocation2], %s243
            %814 = vst [vmem:[%s813] sm:$0xff] %v805
            %815 = vst [vmem:[%s813 + $0x8] sm:$0xff] %v810
            %s816 = scalar_lea.vmem [#allocation9], %s243
            %v817 = vld [vmem:[%s816] sm:$0xff]
            %v818 = vld [vmem:[%s816 + $0x8] sm:$0xff]
            %819 = vmatprep.subr.mxu0 0.0
            %820 = vmatpush1.msra.mxu0 %v244
            %821 = vmatprep.subr.mxu0 0.0
            %822 = vmatpush1.msra.mxu0 %v245
            %823 = vmatprep.subr.mxu0 0.0
            %824 = vmatpush1.msra.mxu0 %v246
            %825 = vmatprep.subr.mxu0 0.0
            %826 = vmatpush1.msra.mxu0 %v247
            %827 = vmatprep.subr.mxu0 0.0
            %828 = vmatpush1.msra.mxu0 %v248
            %829 = vmatprep.subr.mxu0 0.0
            %830 = vmatpush1.msra.mxu0 %v249
            %831 = vmatprep.subr.mxu0 0.0
            %832 = vmatpush1.msra.mxu0 %v250
            %833 = vmatprep.subr.mxu0 0.0
            %834 = vmatpush1.msra.mxu0 %v251
            %835 = vmatprep.subr.mxu0 0.0
            %836 = vmatpush1.msra.mxu0 %v252
            %837 = vmatprep.subr.mxu0 0.0
            %838 = vmatpush1.msra.mxu0 %v253
            %839 = vmatprep.subr.mxu0 0.0
            %840 = vmatpush1.msra.mxu0 %v254
            %841 = vmatprep.subr.mxu0 0.0
            %842 = vmatpush1.msra.mxu0 %v255
            %843 = vmatprep.subr.mxu0 0.0
            %844 = vmatpush1.msra.mxu0 %v256
            %845 = vmatprep.subr.mxu0 0.0
            %846 = vmatpush1.msra.mxu0 %v257
            %847 = vmatprep.subr.mxu0 0.0
            %848 = vmatpush1.msra.mxu0 %v258
            %849 = vmatprep.subr.mxu0 0.0
            %850 = vmatpush1.msra.mxu0 %v259
            %851 = vmatprep.subr.mxu0 0.0
            %852 = vmatpush1.msra.mxu0 0.0
            %853 = vmatprep.subr.mxu0 0.0
            %854 = vmatpush1.msra.mxu0 0.0
            %855 = vmatprep.subr.mxu0 0.0
            %856 = vmatpush1.msra.mxu0 0.0
            %857 = vmatprep.subr.mxu0 0.0
            %858 = vmatpush1.msra.mxu0 0.0
            %859 = vmatprep.subr.mxu0 0.0
            %860 = vmatpush1.msra.mxu0 0.0
            %861 = vmatprep.subr.mxu0 0.0
            %862 = vmatpush1.msra.mxu0 0.0
            %863 = vmatprep.subr.mxu0 0.0
            %864 = vmatpush1.msra.mxu0 0.0
            %865 = vmatprep.subr.mxu0 0.0
            %866 = vmatpush1.msra.mxu0 0.0
            %867 = vmatprep.subr.mxu0 0.0
            %868 = vmatpush1.msra.mxu0 0.0
            %869 = vmatprep.subr.mxu0 0.0
            %870 = vmatpush1.msra.mxu0 0.0
            %871 = vmatprep.subr.mxu0 0.0
            %872 = vmatpush1.msra.mxu0 0.0
            %873 = vmatprep.subr.mxu0 0.0
            %874 = vmatpush1.msra.mxu0 0.0
            %875 = vmatprep.subr.mxu0 0.0
            %876 = vmatpush1.msra.mxu0 0.0
            %877 = vmatprep.subr.mxu0 0.0
            %878 = vmatpush1.msra.mxu0 0.0
            %879 = vmatprep.subr.mxu0 0.0
            %880 = vmatpush1.msra.mxu0 0.0
            %881 = vmatprep.subr.mxu0 0.0
            %882 = vmatpush1.msra.mxu0 0.0
            %883 = vmatprep.mubr.f32.mxu0 0.0
            %884 = vmatmul.mubr.f32.gmra.mrb[0].mxu0 %v805
            %v885 = vpop.f32.mrb[0].mxu0
            %v886 = vadd.f32 0.0, %v885
            %v887 = vpop.f32.mrb[0].mxu0
            %888 = vmatprep.mubr.f32.mxu0 0.0
            %889 = vmatmul.mubr.f32.gmra.mrb[0].mxu0 %v810
            %v890 = vpop.f32.mrb[0].mxu0
            %v891 = vadd.f32 0.0, %v890
            %v892 = vpop.f32.mrb[0].mxu0
            %893 = vdwg.mxu0
            %v894 = vadd.f32 %v817, %v886
            %v895 = vadd.f32 %v818, %v891
            %896 = vst [vmem:[%s816] sm:$0xff] %v894
            %897 = vst [vmem:[%s816 + $0x8] sm:$0xff] %v895
          $region68: #{tpu_custom_call.1} parent=59 // pred_fallthru
            _
        $region60: #{tpu_custom_call.1} parent=35 // pred_fallthru
          _
        // Predicated region
        $region69: #{tpu_custom_call.1} parent=35 // pred_check
          %p898 = pneg %p132
        $region70: #{tpu_custom_call.1} parent=35 // pred_check_branch
          %900 = sbr.rel (%p898) target = $region72
        $region71: #{tpu_custom_call.1} parent=35 // pred_region
          %s902 = ssub.s32 256, 256
          %903 = vsyncadd [#allocation5], %s902
          %s904 = sshll.u32 [#allocation9], 4
          %s905 = int_to_ptr.vmem [resolvable:$true] %s904
          %910 = dma.vmem_to_hbm [thread:$0]  %s905, 256, %s4, [#allocation5], 128, 128, 8
        $region72: #{tpu_custom_call.1} parent=35 // pred_fallthru
          _
        // Predicated region
        $region73: #{tpu_custom_call.1} parent=35 // pred_check
          %p911 = pneg %p132
        $region74: #{tpu_custom_call.1} parent=35 // pred_check_branch
          %913 = sbr.rel (%p911) target = $region76
        $region75: #{tpu_custom_call.1} parent=35 // pred_region
          %914 = dma.done [#allocation5], 256
        $region76: #{tpu_custom_call.1} parent=35 // pred_fallthru
          _
      $region36: #{tpu_custom_call.1} parent=5 // pred_fallthru
        _
      %p915 = scmp.le.s32.totalorder 2, %s13
      // Predicated region
      $region77: #{tpu_custom_call.1} parent=5 // pred_check
        %p916 = pneg %p915
      $region78: #{tpu_custom_call.1} parent=5 // pred_check_branch
        %918 = sbr.rel (%p916) target = $region80
      $region79: #{tpu_custom_call.1} parent=5 // pred_region
        %s919 = ssub.s32 %s13, 2
      $region80: #{tpu_custom_call.1} parent=5 // pred_fallthru
        _
    $region6: #{tpu_custom_call.1} parent=1 // loop_footer
      %s17 = sadd.s32 1, %s13
    $region7: #{tpu_custom_call.1} parent=1 // loop_footer_branch
      %12 = sbr.rel target = $region3
    $region8: #{tpu_custom_call.1} parent=1 // loop_exit
      _
    %920 = vsyncpa [#allocation4], 1
    %s921 = scalar_lea.sflag [#allocation4], 1
    %922 = vsyncpa %s921, 1
    %923 = vsyncpa [#allocation7], 1
    %924 = vsyncpa [#allocation5], 1
    %s925 = scalar_lea.sflag [#allocation5], 1
    %926 = vsyncpa %s925, 1

</llo_original>
